<compile_context>
chip_gen: v6e
topology: v6e:2x2x1
jax: 0.10.0
libtpu: 0.0.40
codegen_flags: <defaults>
</compile_context>

<pallas_src>
import functools
import math

import jax
import jax.numpy as jnp
from jax.experimental import pallas as pl
from jax.experimental.pallas import tpu as pltpu


# ------------------------------- sizing helpers --------------------------------

@functools.lru_cache(maxsize=None)
def _vmem_limit_bytes():
    """Scoped VMEM limit: ~85% of physical (headroom), capped at 100 MiB.
    v5e/v6e (128 MiB) -> 100 MiB; v7x (64 MiB per TC) -> ~54 MiB."""
    try:
        cap = int(pltpu.get_tpu_info().vmem_capacity_bytes)
    except Exception:
        cap = 64 << 20  # conservative fallback
    return int(max(32 << 20, min(int(cap * 0.85), 100 << 20)))


def _compiler_params(dimension_semantics):
    return pltpu.CompilerParams(dimension_semantics=dimension_semantics,
                                vmem_limit_bytes=_vmem_limit_bytes())


def _row_tile(n, cap):
    """Largest power-of-two multiple-of-8 row tile dividing n (<= cap), preferring an even
    grid extent >= 2 so both v7x TensorCores get balanced work."""
    if n % 8 != 0:
        return n
    limit = min(cap, n // 2 if n >= 16 else n)
    t = 8
    while t * 2 <= limit and n % (t * 2) == 0:
        t *= 2
    if t >= 16 and (n // t) % 2 == 1:   # prefer an even number of grid steps
        t //= 2
    return t


def _mem_bound_row_cap(d, n_streams, budget_bytes=24 << 20):
    """Row cap for HBM-bound elementwise kernels, derived from a VMEM byte budget
    (n_streams f32 arrays, double-buffered) instead of a fixed small cap."""
    per_row = n_streams * 2 * d * 4
    cap = max(8, min(1024, budget_bytes // max(per_row, 1)))
    p = 8
    while p * 2 <= cap:
        p *= 2
    return p


def _const_spec(shape, index_map):
    """Grid-invariant operand: single-buffered (its block never changes, so double-buffering
    only wastes VMEM)."""
    try:
        return pl.BlockSpec(shape, index_map, pipeline_mode=pl.Buffered(1))
    except Exception:  # older jax without pipeline_mode / Buffered
        return pl.BlockSpec(shape, index_map)


# ------------------------------ kernel factories -------------------------------

def _make_ln_kernel(d, eps):
    inv_dm1 = 1.0 / max(d - 1, 1)      # torch .std(): unbiased (N-1)

    def kernel(x_ref, p_ref, o_ref):
        x = x_ref[...]                                       # (tm, d) f32
        mean = jnp.mean(x, axis=-1, keepdims=True)
        diff = x - mean
        var = jnp.sum(diff * diff, axis=-1, keepdims=True) * inv_dm1
        inv = pl.reciprocal(jnp.sqrt(var) + eps, approx=True)   # per-row, EUP
        o_ref[...] = p_ref[0:1, :] * (diff * inv) + p_ref[1:2, :]

    return kernel


def _residual_kernel(x_ref, z_ref, o_ref):
    # Dropout(p) is identity in eval mode.
    o_ref[...] = x_ref[...] + z_ref[...]


def _linear_residual_kernel(x_ref, y_ref, w_ref, b_ref, o_ref):
    # out = x + y @ W + b ; W is pre-transposed (Din, Dout) and bf16, f32 accumulation.
    z = jnp.dot(y_ref[...].astype(jnp.bfloat16), w_ref[...],
                preferred_element_type=jnp.float32)
    o_ref[...] = x_ref[...] + z + b_ref[...]


def _make_fused_resident_kernel(d, eps):
    inv_dm1 = 1.0 / max(d - 1, 1)

    def kernel(x_ref, p_ref, w_ref, o_ref):
        x = x_ref[...]                                       # (tm, d) f32
        mean = jnp.mean(x, axis=-1, keepdims=True)
        diff = x - mean
        var = jnp.sum(diff * diff, axis=-1, keepdims=True) * inv_dm1
        inv = pl.reciprocal(jnp.sqrt(var) + eps, approx=True)
        y = p_ref[0:1, :] * (diff * inv) + p_ref[1:2, :]     # LayerNorm
        z = jnp.dot(y.astype(jnp.bfloat16), w_ref[...],      # bf16 MXU, f32 accumulate
                    preferred_element_type=jnp.float32)
        o_ref[...] = x + z + p_ref[2:3, :]                   # residual; dropout = identity

    return kernel


def _make_fused_tiled_kernel(d, eps, tn, tk):
    inv_dm1 = 1.0 / max(d - 1, 1)

    def kernel(x_ref, ab_ref, w_ref, bias_ref, o_ref, acc_ref, stat_ref):
        j = pl.program_id(1)
        k = pl.program_id(2)

        @pl.when(k == 0)
        def _():
            x = x_ref[...]                                   # (tm, d), resident across j,k
            mean = jnp.mean(x, axis=-1, keepdims=True)
            diff = x - mean
            var = jnp.sum(diff * diff, axis=-1, keepdims=True) * inv_dm1
            stat_ref[:, 0:1] = mean
            stat_ref[:, 1:2] = pl.reciprocal(jnp.sqrt(var) + eps, approx=True)
            acc_ref[...] = jnp.zeros_like(acc_ref)

        koff = pl.multiple_of(k * tk, tk)
        xk = x_ref[:, pl.ds(koff, tk)]                       # (tm, tk) slice of resident x
        yk = ab_ref[0:1, :] * ((xk - stat_ref[:, 0:1]) * stat_ref[:, 1:2]) + ab_ref[1:2, :]
        acc_ref[...] += jnp.dot(yk.astype(jnp.bfloat16), w_ref[...],
                                preferred_element_type=jnp.float32)

        @pl.when(k == pl.num_programs(2) - 1)
        def _():
            joff = pl.multiple_of(j * tn, tn)
            xj = x_ref[:, pl.ds(joff, tn)]
            o_ref[...] = xj + acc_ref[...] + bias_ref[...]   # residual + bias writeback

    return kernel


# --------------------------------- wrappers ------------------------------------

def layernorm_pallas(x, a2, b2, eps=1e-6):
    """LayerNorm over the last axis with torch-module semantics. x: (..., d) f32."""
    *lead, d = x.shape
    n = math.prod(lead)
    x2 = x.reshape(n, d)
    params = jnp.stack([a2, b2]).astype(jnp.float32)         # (2, d): one DMA stream
    tm = _row_tile(n, _mem_bound_row_cap(d, n_streams=2))
    assert n % tm == 0, (n, tm)
    y = pl.pallas_call(
        _make_ln_kernel(d, eps),
        out_shape=jax.ShapeDtypeStruct((n, d), jnp.float32),
        grid=(n // tm,),
        in_specs=[
            pl.BlockSpec((tm, d), lambda i: (i, 0)),
            _const_spec((2, d), lambda i: (0, 0)),
        ],
        out_specs=pl.BlockSpec((tm, d), lambda i: (i, 0)),
        compiler_params=_compiler_params(("parallel",)),
    )(x2, params)
    return y.reshape(x.shape)


def residual_add_pallas(x, z):
    """x + z (Dropout identity in eval mode)."""
    *lead, d = x.shape
    n = math.prod(lead)
    tm = _row_tile(n, _mem_bound_row_cap(d, n_streams=3))
    assert n % tm == 0, (n, tm)
    y = pl.pallas_call(
        _residual_kernel,
        out_shape=jax.ShapeDtypeStruct((n, d), jnp.float32),
        grid=(n // tm,),
        in_specs=[pl.BlockSpec((tm, d), lambda i: (i, 0)),
                  pl.BlockSpec((tm, d), lambda i: (i, 0))],
        out_specs=pl.BlockSpec((tm, d), lambda i: (i, 0)),
        compiler_params=_compiler_params(("parallel",)),
    )(x.reshape(n, d), z.reshape(n, d))
    return y.reshape(x.shape)


def linear_residual_pallas(x, y, w_bf16, bias):
    """out = x + y @ W + bias in ONE launch (residual folded into the matmul kernel)."""
    *lead, d = x.shape
    n = math.prod(lead)
    w_bf16 = w_bf16.astype(jnp.bfloat16)
    dout = w_bf16.shape[1]
    tm = _row_tile(n, 256)        # MXU-bound: keep live (tm,d) intermediates modest
    assert n % tm == 0, (n, tm)
    out = pl.pallas_call(
        _linear_residual_kernel,
        out_shape=jax.ShapeDtypeStruct((n, dout), jnp.float32),
        grid=(n // tm,),
        in_specs=[
            pl.BlockSpec((tm, d), lambda i: (i, 0)),
            pl.BlockSpec((tm, d), lambda i: (i, 0)),
            _const_spec((d, dout), lambda i: (0, 0)),
            _const_spec((1, dout), lambda i: (0, 0)),
        ],
        out_specs=pl.BlockSpec((tm, dout), lambda i: (i, 0)),
        compiler_params=_compiler_params(("parallel",)),
        cost_estimate=pl.CostEstimate(
            flops=2 * n * d * dout + 2 * n * dout,
            transcendentals=0,
            bytes_accessed=2 * n * d * 4 + n * dout * 4 + d * dout * 2 + dout * 4),
    )(x.reshape(n, d), y.reshape(n, d), w_bf16, bias.reshape(1, dout))
    return out.reshape(*lead, dout)


def _fused_resident(x2, a2, b2, w_bf16, bias, eps):
    n, d = x2.shape
    params = jnp.stack([a2, b2, bias]).astype(jnp.float32)   # (3, d): one DMA stream
    tm = _row_tile(n, 256)
    assert n % tm == 0, (n, tm)
    return pl.pallas_call(
        _make_fused_resident_kernel(d, eps),
        out_shape=jax.ShapeDtypeStruct((n, d), jnp.float32),
        grid=(n // tm,),
        in_specs=[
            pl.BlockSpec((tm, d), lambda i: (i, 0)),
            _const_spec((3, d), lambda i: (0, 0)),
            _const_spec((d, d), lambda i: (0, 0)),           # single-buffered bf16 weight
        ],
        out_specs=pl.BlockSpec((tm, d), lambda i: (i, 0)),
        compiler_params=_compiler_params(("parallel",)),
        cost_estimate=pl.CostEstimate(
            flops=2 * n * d * d + 10 * n * d,
            transcendentals=n,
            bytes_accessed=2 * n * d * 4 + d * d * 2 + 3 * d * 4),
    )(x2, params, w_bf16)


def _fused_tiled(x2, a2, b2, w_bf16, bias, eps):
    n, d = x2.shape
    tnk = 256 if d % 256 == 0 else 128                       # MXU-aligned N/K tiles
    tn = tk = tnk
    tm = _row_tile(n, 256)
    assert n % tm == 0 and d % tn == 0 and d % tk == 0, (n, tm, d, tn, tk)
    ab = jnp.stack([a2, b2]).astype(jnp.float32)             # (2, d)
    grid = (n // tm, d // tn, d // tk)                       # reduction axis (k) last
    return pl.pallas_call(
        _make_fused_tiled_kernel(d, eps, tn, tk),
        out_shape=jax.ShapeDtypeStruct((n, d), jnp.float32),
        grid=grid,
        in_specs=[
            pl.BlockSpec((tm, d), lambda i, j, k: (i, 0)),   # x resident across j, k
            pl.BlockSpec((2, tk), lambda i, j, k: (0, k)),
            pl.BlockSpec((tk, tn), lambda i, j, k: (k, j)),
            pl.BlockSpec((1, tn), lambda i, j, k: (0, j)),
        ],
        out_specs=pl.BlockSpec((tm, tn), lambda i, j, k: (i, j)),
        scratch_shapes=[pltpu.VMEM((tm, tn), jnp.float32),   # f32 accumulator
                        pltpu.VMEM((tm, 2), jnp.float32)],   # per-row (mean, 1/(std+eps))
        compiler_params=_compiler_params(("parallel", "parallel", "arbitrary")),
        cost_estimate=pl.CostEstimate(
            flops=2 * n * d * d + 10 * n * d,
            transcendentals=n * (d // tn),
            bytes_accessed=2 * n * d * 4 + d * d * 2 + 3 * d * 4),
    )(x2, ab, w_bf16, bias.reshape(1, d))


def sublayer_connection_linear_fused(x, a2, b2, w_bf16, bias, eps=1e-6, force_tiled=False):
    """Fast path for a Linear sublayer: LayerNorm + (y @ W + b) + residual in ONE pallas_call.
    Dispatches to an N/K-tiled variant when the (d,d) weight is too big to sit resident in
    VMEM (mandatory for large d_model on v7x's 64 MiB VMEM)."""
    *lead, d = x.shape
    n = math.prod(lead)
    x2 = x.reshape(n, d)
    w_bf16 = w_bf16.astype(jnp.bfloat16)
    weight_bytes = d * d * 2
    use_tiled = (force_tiled or weight_bytes > (4 << 20)) and (d % 128 == 0)
    if use_tiled:
        y = _fused_tiled(x2, a2, b2, w_bf16, bias, eps)
    else:
        y = _fused_resident(x2, a2, b2, w_bf16, bias, eps)
    return y.reshape(x.shape)


def sublayer_connection_linear_2call(x, a2, b2, w_bf16, bias, eps=1e-6):
    """LayerNorm kernel + fused (linear + residual) kernel: 2 launches, residual folded so the
    (n,d) activation makes no extra HBM round trip."""
    y = layernorm_pallas(x, a2, b2, eps)
    return linear_residual_pallas(x, y, w_bf16, bias)


def sublayer_connection(x, sublayer, a2, b2, eps=1e-6):
    """Generic path: x + Dropout(sublayer(LayerNorm(x))) for an arbitrary JAX callable."""
    y = layernorm_pallas(x, a2, b2, eps)
    z = sublayer(y)
    return residual_add_pallas(x, z)     # Dropout(p) identity in eval mode


# -------------------------------- reference (jnp) -------------------------------

def _ref_layernorm(x, a2, b2, eps):
    mean = x.mean(-1, keepdims=True)
    var = jnp.sum((x - mean) ** 2, axis=-1, keepdims=True) / max(x.shape[-1] - 1, 1)
    return a2 * (x - mean) / (jnp.sqrt(var) + eps) + b2


def _ref_sublayer_connection_linear(x, a2, b2, w, bias, eps):
    y = _ref_layernorm(x, a2, b2, eps)
    return x + (y @ w + bias)            # dropout identity (eval mode)


# ------------------------------------ main ---------------------------------------

if __name__ == "__main__":
    B, S, D = 2, 8, 128                  # d_model multiple of 128 -> lane-dense loads/stores
    eps = 1e-6

    root = jax.random.PRNGKey(0)
    ks = jax.random.split(root, 5)

    x = jax.random.normal(ks[0], (B, S, D), dtype=jnp.float32)
    a2 = (1.0 + 0.1 * jax.random.normal(ks[1], (D,))).astype(jnp.float32)
    b2 = (0.1 * jax.random.normal(ks[2], (D,))).astype(jnp.float32)

    # Demo Linear sublayer.  Weight stored PRE-TRANSPOSED (Din, Dout) and in bf16 once at
    # parameter-load time (native MXU dtype; half the weight DMA / VMEM).
    w_bf16 = (0.1 * jax.random.normal(ks[3], (D, D))).astype(jnp.bfloat16)
    bias = (0.05 * jax.random.normal(ks[4], (D,))).astype(jnp.float32)
    w_f32 = w_bf16.astype(jnp.float32)   # identical values for the f32 reference

    ref = _ref_sublayer_connection_linear(x, a2, b2, w_f32, bias, eps)

    # 1) single-launch fused path (weight resident in VMEM)
    out_fused = jax.block_until_ready(
        sublayer_connection_linear_fused(x, a2, b2, w_bf16, bias, eps))

    # 2) two-launch path: LayerNorm kernel + fused (linear + residual) kernel
    out_2call = jax.block_until_ready(
        sublayer_connection_linear_2call(x, a2, b2, w_bf16, bias, eps))

    # 3) fully generic path (arbitrary sublayer callable; plain-jnp linear here)
    sub = lambda y: jnp.einsum("bsd,de->bse", y, w_f32) + bias
    out_generic = jax.block_until_ready(sublayer_connection(x, sub, a2, b2, eps))

    assert out_fused.shape == (B, S, D)
    assert jnp.allclose(out_fused, ref, atol=3e-2, rtol=3e-2), \
        float(jnp.max(jnp.abs(out_fused - ref)))
    assert jnp.allclose(out_2call, ref, atol=3e-2, rtol=3e-2), \
        float(jnp.max(jnp.abs(out_2call - ref)))
    assert jnp.allclose(out_generic, ref, atol=1e-2, rtol=1e-2), \
        float(jnp.max(jnp.abs(out_generic - ref)))

    # 4) N/K-tiled fused path, exercised at a larger d_model (the variant required on v7x when
    #    a resident (d,d) weight would not fit the 64 MiB VMEM).
    D2 = 512
    kt = jax.random.split(jax.random.PRNGKey(1), 5)
    x_t = jax.random.normal(kt[0], (B, S, D2), dtype=jnp.float32)
    a2_t = (1.0 + 0.1 * jax.random.normal(kt[1], (D2,))).astype(jnp.float32)
    b2_t = (0.1 * jax.random.normal(kt[2], (D2,))).astype(jnp.float32)
    w_t = (0.05 * jax.random.normal(kt[3], (D2, D2))).astype(jnp.bfloat16)
    bias_t = (0.05 * jax.random.normal(kt[4], (D2,))).astype(jnp.float32)
    out_tiled = jax.block_until_ready(
        sublayer_connection_linear_fused(x_t, a2_t, b2_t, w_t, bias_t, eps, force_tiled=True))
    ref_t = _ref_sublayer_connection_linear(x_t, a2_t, b2_t, w_t.astype(jnp.float32),
                                            bias_t, eps)
    assert out_tiled.shape == (B, S, D2)
    assert jnp.allclose(out_tiled, ref_t, atol=5e-2, rtol=5e-2), \
        float(jnp.max(jnp.abs(out_tiled - ref_t)))

    print("KERNEL_OK")
</pallas_src>

<mosaic_0001>
module attributes {stable_mosaic.version = 11 : i64} {
  func.func @kernel(%arg0: i32, %arg1: memref<8x128xf32, #tpu.memory_space<vmem>>, %arg2: memref<3x128xf32, #tpu.memory_space<vmem>>, %arg3: memref<128x128xbf16, #tpu.memory_space<vmem>>, %arg4: memref<8x128xf32, #tpu.memory_space<vmem>>) attributes {dimension_semantics = [#tpu.dimension_semantics<parallel>], iteration_bounds = array<i64: 2>, scalar_prefetch = 0 : i64, scratch_operands = 0 : i64, tpu.core_type = #tpu.core_type<tc>, window_params = [{transform_indices = @transform_0, window_bounds = array<i64: 8, 128>}, {pipeline_mode = #tpu.pipeline_mode<synchronous>, transform_indices = @transform_1, window_bounds = array<i64: 3, 128>}, {pipeline_mode = #tpu.pipeline_mode<synchronous>, transform_indices = @transform_2, window_bounds = array<i64: 128, 128>}, {transform_indices = @transform_3, window_bounds = array<i64: 8, 128>}]} {
    %c0 = arith.constant 0 : index
    %c0_0 = arith.constant 0 : index
    %0 = vector.load %arg1[%c0, %c0_0] : memref<8x128xf32, #tpu.memory_space<vmem>>, vector<8x128xf32>
    %cst = arith.constant dense<0.000000e+00> : vector<8xf32>
    %1 = vector.multi_reduction <add>, %0, %cst [1] : vector<8x128xf32> to vector<8xf32>
    %2 = vector.shape_cast %1 : vector<8xf32> to vector<8x1xf32>
    %cst_1 = arith.constant 1.280000e+02 : f32
    %3 = vector.broadcast %cst_1 : f32 to vector<8x1xf32>
    %4 = arith.divf %2, %3 : vector<8x1xf32>
    %5 = vector.broadcast %4 : vector<8x1xf32> to vector<8x128xf32>
    %6 = arith.subf %0, %5 : vector<8x128xf32>
    %7 = arith.mulf %6, %6 : vector<8x128xf32>
    %cst_2 = arith.constant dense<0.000000e+00> : vector<8xf32>
    %8 = vector.multi_reduction <add>, %7, %cst_2 [1] : vector<8x128xf32> to vector<8xf32>
    %9 = vector.shape_cast %8 : vector<8xf32> to vector<8x1xf32>
    %cst_3 = arith.constant 0.00787401571 : f32
    %10 = vector.broadcast %cst_3 : f32 to vector<8x1xf32>
    %11 = arith.mulf %9, %10 : vector<8x1xf32>
    %12 = math.sqrt %11 : vector<8x1xf32>
    %cst_4 = arith.constant 9.99999997E-7 : f32
    %13 = vector.broadcast %cst_4 : f32 to vector<8x1xf32>
    %14 = arith.addf %12, %13 : vector<8x1xf32>
    %15 = tpu.reciprocal %14 {approx = true} : vector<8x1xf32> -> vector<8x1xf32>
    %c0_5 = arith.constant 0 : index
    %c0_6 = arith.constant 0 : index
    %16 = vector.load %arg2[%c0_5, %c0_6] : memref<3x128xf32, #tpu.memory_space<vmem>>, vector<1x128xf32>
    %17 = vector.broadcast %15 : vector<8x1xf32> to vector<8x128xf32>
    %18 = arith.mulf %6, %17 : vector<8x128xf32>
    %19 = vector.broadcast %16 : vector<1x128xf32> to vector<8x128xf32>
    %20 = arith.mulf %19, %18 : vector<8x128xf32>
    %c1 = arith.constant 1 : index
    %c0_7 = arith.constant 0 : index
    %21 = vector.load %arg2[%c1, %c0_7] : memref<3x128xf32, #tpu.memory_space<vmem>>, vector<1x128xf32>
    %22 = vector.broadcast %21 : vector<1x128xf32> to vector<8x128xf32>
    %23 = arith.addf %20, %22 : vector<8x128xf32>
    %24 = arith.truncf %23 : vector<8x128xf32> to vector<8x128xbf16>
    %c0_8 = arith.constant 0 : index
    %c0_9 = arith.constant 0 : index
    %25 = vector.load %arg3[%c0_8, %c0_9] : memref<128x128xbf16, #tpu.memory_space<vmem>>, vector<128x128xbf16>
    %cst_10 = arith.constant dense<0.000000e+00> : vector<8x128xf32>
    %26 = tpu.matmul %24, %25, %cst_10 {dimension_numbers = #tpu.dot_dimension_numbers<[1], [0], [0], [1], [0, 0, 1, 1], [], []>} : vector<8x128xbf16>, vector<128x128xbf16>, vector<8x128xf32> -> vector<8x128xf32>
    %27 = arith.addf %0, %26 : vector<8x128xf32>
    %c2 = arith.constant 2 : index
    %c0_11 = arith.constant 0 : index
    %28 = vector.load %arg2[%c2, %c0_11] : memref<3x128xf32, #tpu.memory_space<vmem>>, vector<1x128xf32>
    %29 = vector.broadcast %28 : vector<1x128xf32> to vector<8x128xf32>
    %30 = arith.addf %27, %29 : vector<8x128xf32>
    %c0_12 = arith.constant 0 : index
    %c0_13 = arith.constant 0 : index
    %31 = vector.load %arg4[%c0_12, %c0_13] : memref<8x128xf32, #tpu.memory_space<vmem>>, vector<8x128xf32>
    tpu.vector_store %arg4[%c0_12, %c0_13], %30 {strides = array<i32>} : memref<8x128xf32, #tpu.memory_space<vmem>>, vector<8x128xf32>,
    return
  }
  func.func @transform_0(%arg0: i32) -> (i32, i32) {
    %c0_i32 = arith.constant 0 : i32
    %c0_i32_0 = arith.constant 0 : i32
    return %arg0, %c0_i32 : i32, i32
  }
  func.func @transform_1(%arg0: i32) -> (i32, i32) {
    %c0_i32 = arith.constant 0 : i32
    %c0_i32_0 = arith.constant 0 : i32
    %c0_i32_1 = arith.constant 0 : i32
    return %c0_i32, %c0_i32_0 : i32, i32
  }
  func.func @transform_2(%arg0: i32) -> (i32, i32) {
    %c0_i32 = arith.constant 0 : i32
    %c0_i32_0 = arith.constant 0 : i32
    %c0_i32_1 = arith.constant 0 : i32
    return %c0_i32, %c0_i32_0 : i32, i32
  }
  func.func @transform_3(%arg0: i32) -> (i32, i32) {
    %c0_i32 = arith.constant 0 : i32
    %c0_i32_0 = arith.constant 0 : i32
    return %arg0, %c0_i32 : i32, i32
  }
}

</mosaic_0001>

<llo_original>
// kernel: tpu_custom_call.1
$region0: #{tpu_custom_call.1}
  #allocation0 [shape = 'u32[]', space=smem, size = 0x4, offset = 0x4, fixed_abs, tag = 'smem constant byte address 0x4 - core index']
  #allocation1 [shape = 'u32[144,128]{1,0:T(1,128)}', space=vmem, size = 0x12000, scoped, tag = 'internal scratch']
  %s0 = inlined_call_operand.hbm [shape: f32[16,128], index: 0, kind: input, shape index: {}]
  %s1 = inlined_call_operand.hbm [shape: f32[3,128], index: 1, kind: input, shape index: {}]
  %s2 = inlined_call_operand.hbm [shape: bf16[128,128], index: 2, kind: input, shape index: {}]
  %s3 = inlined_call_operand.hbm [shape: f32[16,128], index: 3, kind: output, shape index: {}]
  %s4 = sld [smem:[#allocation0]]
  $region57: #{tpu_custom_call.1} parent=0
    _
  %s6 = ssub.s32 1, %s4
  %s7 = scalar_select 0, %s6, %s4
  $region1: #{tpu_custom_call.1} parent=0
    #allocation2 [shape = 'u8[8192]{0}', space=vmem, size = 0x2000, scoped, tag = 'input window, operand 0']
    #allocation3 [shape = 's32[2]{0}', space=sflag, size = 0x8, scoped, tag = 'scoped memory for tpu_custom_call.1']
    #allocation4 [shape = 's32[2]{0}', space=sflag, size = 0x8, scoped, tag = 'scoped memory for tpu_custom_call.1']
    #allocation5 [shape = 'u8[2048]{0}', space=vmem, size = 0x800, scoped, tag = 'input window, operand 1, single buffered']
    #allocation6 [shape = 's32[1]{0}', space=sflag, size = 0x4, scoped, tag = 'scoped memory for tpu_custom_call.1']
    #allocation7 [shape = 'u8[32768]{0}', space=vmem, size = 0x8000, scoped, tag = 'input window, operand 2, single buffered']
    #allocation8 [shape = 'u8[8192]{0}', space=vmem, size = 0x2000, scoped, tag = 'output window, operand 0']
    %8 = vsyncpa [#allocation3], 0
    %s9 = scalar_lea.sflag [#allocation3], 1
    %10 = vsyncpa %s9, 0
    %11 = vsyncpa [#allocation6], 0
    %12 = vsyncpa [#allocation4], 0
    %s13 = scalar_lea.sflag [#allocation4], 1
    %14 = vsyncpa %s13, 0
    loop: start=0, step=1, limit=4
    $region2: #{tpu_custom_call.1} parent=1 // loop_pre_header
      _
    $region3: #{tpu_custom_call.1} parent=1 // loop_header
      %s16 = sphi 0, %s20
      %p17 = scmp.ge.s32.totalorder %s16, 4
      %s26 = sphi 0, %s28
      %s29 = sphi 0, %s26
      %s30 = sphi 0, %s29
      %s46 = sphi 0, %s30
      %s50 = sphi 0, %s50
      %s52 = sphi 0, %s50
      %s53 = sphi 0, %s52
      %s67 = sphi 0, %s53
      %s71 = sphi 0, %s71
      %s73 = sphi 0, %s71
      %s74 = sphi 0, %s73
      %s88 = sphi 0, %s74
      %s94 = sphi 0, %s96
      %s97 = sphi 0, %s94
      %s98 = sphi 0, %s97
      %s114 = sphi 0, %s98
    $region4: #{tpu_custom_call.1} parent=1 // loop_header_branch
      %19 = sbr.rel (%p17) target = $region8
    $region5: #{tpu_custom_call.1} parent=1 // loop_body
      %s21 = ssub.s32 %s16, 1
      %s22 = ssub.s32 %s16, 2
      %s23 = sadd.s32 %s16, 1
      %s24 = ssub.s32 %s16, %s23
      %p25 = scmp.eq.s32.totalorder %s24, 0
      %s27 = sadd.s32 %s26, 1
      %s28 = scalar_select %p25, %s26, %s27
      %p31 = pneg %p25
      %p32 = scmp.eq.s32.totalorder %s16, 1
      %p33 = por %p31, %p32
      %p34 = scmp.ne.s32.totalorder %s26, %s29
      %p35 = scmp.eq.s32.totalorder %s16, 0
      %p36 = por %p34, %p35
      %p37 = scmp.ne.s32.totalorder %s26, %s29
      %p38 = scmp.eq.s32.totalorder %s21, 1
      %p39 = por %p37, %p38
      %p40 = scmp.ne.s32.totalorder %s29, %s30
      %p41 = scmp.eq.s32.totalorder %s21, 0
      %p42 = por %p40, %p41
      %p43 = scmp.ne.s32.totalorder %s29, %s30
      %p44 = scmp.eq.s32.totalorder %s22, 1
      %p45 = por %p43, %p44
      %p47 = scmp.ne.s32.totalorder %s30, %s46
      %p48 = scmp.eq.s32.totalorder %s22, 0
      %p49 = por %p47, %p48
      %s51 = sadd.s32 %s50, 1
      %p54 = scmp.eq.s32.totalorder %s16, 1
      %p55 = scmp.ne.s32.totalorder %s50, %s52
      %p56 = scmp.eq.s32.totalorder %s16, 0
      %p57 = por %p55, %p56
      %p58 = scmp.ne.s32.totalorder %s50, %s52
      %p59 = scmp.eq.s32.totalorder %s21, 1
      %p60 = por %p58, %p59
      %p61 = scmp.ne.s32.totalorder %s52, %s53
      %p62 = scmp.eq.s32.totalorder %s21, 0
      %p63 = por %p61, %p62
      %p64 = scmp.ne.s32.totalorder %s52, %s53
      %p65 = scmp.eq.s32.totalorder %s22, 1
      %p66 = por %p64, %p65
      %p68 = scmp.ne.s32.totalorder %s53, %s67
      %p69 = scmp.eq.s32.totalorder %s22, 0
      %p70 = por %p68, %p69
      %s72 = sadd.s32 %s71, 1
      %p75 = scmp.eq.s32.totalorder %s16, 1
      %p76 = scmp.ne.s32.totalorder %s71, %s73
      %p77 = scmp.eq.s32.totalorder %s16, 0
      %p78 = por %p76, %p77
      %p79 = scmp.ne.s32.totalorder %s71, %s73
      %p80 = scmp.eq.s32.totalorder %s21, 1
      %p81 = por %p79, %p80
      %p82 = scmp.ne.s32.totalorder %s73, %s74
      %p83 = scmp.eq.s32.totalorder %s21, 0
      %p84 = por %p82, %p83
      %p85 = scmp.ne.s32.totalorder %s73, %s74
      %p86 = scmp.eq.s32.totalorder %s22, 1
      %p87 = por %p85, %p86
      %p89 = scmp.ne.s32.totalorder %s74, %s88
      %p90 = scmp.eq.s32.totalorder %s22, 0
      %p91 = por %p89, %p90
      %s92 = ssub.s32 %s16, %s23
      %p93 = scmp.eq.s32.totalorder %s92, 0
      %s95 = sadd.s32 %s94, 1
      %s96 = scalar_select %p93, %s94, %s95
      %p99 = pneg %p93
      %p100 = scmp.eq.s32.totalorder %s16, 1
      %p101 = por %p99, %p100
      %p102 = scmp.ne.s32.totalorder %s94, %s97
      %p103 = scmp.eq.s32.totalorder %s16, 0
      %p104 = por %p102, %p103
      %p105 = scmp.ne.s32.totalorder %s94, %s97
      %p106 = scmp.eq.s32.totalorder %s21, 1
      %p107 = por %p105, %p106
      %p108 = scmp.ne.s32.totalorder %s97, %s98
      %p109 = scmp.eq.s32.totalorder %s21, 0
      %p110 = por %p108, %p109
      %p111 = scmp.ne.s32.totalorder %s97, %s98
      %p112 = scmp.eq.s32.totalorder %s22, 1
      %p113 = por %p111, %p112
      %p115 = scmp.ne.s32.totalorder %s98, %s114
      %p116 = scmp.eq.s32.totalorder %s22, 0
      %p117 = por %p115, %p116
      %p118 = scmp.le.s32.totalorder 1, %s16
      %p119 = scmp.lt.s32.totalorder %s16, 3
      %p120 = pnand %p118, %p119
      %p121 = pneg %p120
      // Predicated region
      $region9: #{tpu_custom_call.1} parent=5 // pred_check
        _
      $region10: #{tpu_custom_call.1} parent=5 // pred_check_branch
        %123 = sbr.rel (%p120) target = $region12
      $region11: #{tpu_custom_call.1} parent=5 // pred_region
        %s124 = ssub.s32 %s16, 1
        // Predicated region
        $region13: #{tpu_custom_call.1} parent=11 // pred_check
          %p125 = pneg %p63
        $region14: #{tpu_custom_call.1} parent=11 // pred_check_branch
          %127 = sbr.rel (%p125) target = $region16
        $region15: #{tpu_custom_call.1} parent=11 // pred_region
          %s129 = ssub.s32 64, 64
          %130 = vsyncadd [#allocation6], %s129
          %s132 = sshll.u32 [#allocation5], 4
          %s133 = int_to_ptr.vmem [resolvable:$true] %s132
          %135 = dma.hbm_to_vmem [thread:$0]  %s1, 64, %s133, [#allocation6]
        $region16: #{tpu_custom_call.1} parent=11 // pred_fallthru
          _
        // Predicated region
        $region17: #{tpu_custom_call.1} parent=11 // pred_check
          %p136 = pneg %p84
        $region18: #{tpu_custom_call.1} parent=11 // pred_check_branch
          %138 = sbr.rel (%p136) target = $region20
        $region19: #{tpu_custom_call.1} parent=11 // pred_region
          %s140 = ssub.s32 1024, 1024
          %141 = vsyncadd [#allocation6], %s140
          %s142 = sshll.u32 [#allocation7], 4
          %s143 = int_to_ptr.vmem [resolvable:$true] %s142
          %148 = dma.hbm_to_vmem [thread:$0]  %s2, 1024, %s143, [#allocation6], 64, 64, 4
        $region20: #{tpu_custom_call.1} parent=11 // pred_fallthru
          _
      $region12: #{tpu_custom_call.1} parent=5 // pred_fallthru
        _
      %p149 = scmp.lt.s32.totalorder %s16, 2
      // Predicated region
      $region21: #{tpu_custom_call.1} parent=5 // pred_check
        %p150 = pneg %p149
      $region22: #{tpu_custom_call.1} parent=5 // pred_check_branch
        %152 = sbr.rel (%p150) target = $region24
      $region23: #{tpu_custom_call.1} parent=5 // pred_region
        // Predicated region
        $region25: #{tpu_custom_call.1} parent=23 // pred_check
          %p153 = pneg %p36
        $region26: #{tpu_custom_call.1} parent=23 // pred_check_branch
          %155 = sbr.rel (%p153) target = $region28
        $region27: #{tpu_custom_call.1} parent=23 // pred_region
          %s156 = sand.u32 %s26, 1
          %s157 = scalar_lea.sflag [#allocation3], %s156
          %s158 = sand.u32 %s26, 1
          %s159 = smul.addr %s158, 8
          %s160 = scalar_lea.vmem [#allocation2], %s159
          %s162 = ssub.s32 128, 128
          %163 = vsyncadd %s157, %s162
          %s164 = smul.addr %s16, 128
          %s165 = scalar_lea.hbm %s0, %s164
          %s167 = sshll.u32 %s160, 4
          %s168 = int_to_ptr.vmem [resolvable:$true] %s167
          %170 = dma.hbm_to_vmem [thread:$0]  %s165, 128, %s168, %s157
        $region28: #{tpu_custom_call.1} parent=23 // pred_fallthru
          _
      $region24: #{tpu_custom_call.1} parent=5 // pred_fallthru
        _
      %p171 = scmp.le.s32.totalorder 1, %s16
      %p172 = scmp.lt.s32.totalorder %s16, 3
      %p173 = pnand %p171, %p172
      %p174 = pneg %p173
      // Predicated region
      $region29: #{tpu_custom_call.1} parent=5 // pred_check
        _
      $region30: #{tpu_custom_call.1} parent=5 // pred_check_branch
        %176 = sbr.rel (%p173) target = $region32
      $region31: #{tpu_custom_call.1} parent=5 // pred_region
        %s177 = ssub.s32 %s16, 1
        %s178 = sand.u32 %s29, 1
        %s179 = scalar_lea.sflag [#allocation3], %s178
        %s180 = sand.u32 %s29, 1
        %s181 = smul.addr %s180, 8
        %s182 = scalar_lea.vmem [#allocation2], %s181
        // Predicated region
        $region33: #{tpu_custom_call.1} parent=31 // pred_check
          %p183 = pneg %p42
        $region34: #{tpu_custom_call.1} parent=31 // pred_check_branch
          %185 = sbr.rel (%p183) target = $region36
        $region35: #{tpu_custom_call.1} parent=31 // pred_region
          %186 = dma.done %s179, 128
        $region36: #{tpu_custom_call.1} parent=31 // pred_fallthru
          _
        // Predicated region
        $region37: #{tpu_custom_call.1} parent=31 // pred_check
          %p187 = pneg %p63
        $region38: #{tpu_custom_call.1} parent=31 // pred_check_branch
          %189 = sbr.rel (%p187) target = $region40
        $region39: #{tpu_custom_call.1} parent=31 // pred_region
          %190 = dma.done [#allocation6], 64
        $region40: #{tpu_custom_call.1} parent=31 // pred_fallthru
          _
        // Predicated region
        $region41: #{tpu_custom_call.1} parent=31 // pred_check
          %p191 = pneg %p84
        $region42: #{tpu_custom_call.1} parent=31 // pred_check_branch
          %193 = sbr.rel (%p191) target = $region44
        $region43: #{tpu_custom_call.1} parent=31 // pred_region
          %194 = dma.done [#allocation6], 1024
        $region44: #{tpu_custom_call.1} parent=31 // pred_fallthru
          _
        %s195 = sand.u32 %s29, 1
        %s196 = scalar_lea.sflag [#allocation3], %s195
        %s197 = sand.u32 %s29, 1
        %s198 = smul.addr %s197, 8
        %s199 = scalar_lea.vmem [#allocation2], %s198
        %p200 = pneg %p42
        %p201 = pneg %p39
        %p202 = pneg %p63
        %p203 = pneg %p60
        %p204 = pneg %p84
        %p205 = pneg %p81
        %p206 = pneg %p110
        %p207 = pneg %p107
        %s208 = sand.u32 %s97, 1
        %s209 = scalar_lea.sflag [#allocation4], %s208
        %s210 = sand.u32 %s97, 1
        %s211 = smul.addr %s210, 8
        %s212 = scalar_lea.vmem [#allocation8], %s211
        %v214 = vld [vmem:[%s182] sm:$0xff]
        %215 = vadd.xlane.f32.xlu0 %v214
        %v216 = vpop.xlane.xlu0 %215
        %v217 = vrcp.pop 128.0
        %v218 = vmul.f32 %v216, %v217
        %v219 = vsub.f32 %v214, %v218
        %v220 = vmul.f32 %v219, %v219
        %221 = vadd.xlane.f32.xlu0 %v220
        %v222 = vpop.xlane.xlu0 %221
        %v223 = vmul.f32 %v222, 0.007874016
        %v224 = vrsqrt.pop %v223
        %v225 = vmul.f32 %v223, %v224
        %vm226 = vcmp.eq.f32.partialorder %v223, inf
        %v227 = vsel %vm226, %v223, %v225
        %vm228 = vcmp.eq.f32.partialorder %v223, 0.0
        %v229 = vand.u32 %v223, 2147483648
        %v230 = vsel %vm228, %v229, %v227
        %v231 = vadd.f32 %v230, 1e-06
        %v232 = vrcp.pop %v231
        %v233 = vld [vmem:[#allocation5] sm:$0x1]
        %v234 = vmul.f32 %v219, %v232
        %v235 = vlaneseq
        %v236 = vshrl.u32 %v235, 7
        %v237 = vsub.s32 0, %v236
        %v238 = vrot.slane %v233, %v237
        %v239 = vmul.f32 %v238, %v234
        %v240 = vld [vmem:[#allocation5 + $0x1] sm:$0x1]
        %v241 = vlaneseq
        %v242 = vshrl.u32 %v241, 7
        %v243 = vsub.s32 0, %v242
        %v244 = vrot.slane %v240, %v243
        %v245 = vadd.f32 %v239, %v244
        %v246 = vpack.c.bf16 %v245, %v245
        %v247 = vld [vmem:[#allocation7] sm:$0xf]
        %v248 = vld [vmem:[#allocation7 + $0x4] sm:$0xf]
        %v249 = vld [vmem:[#allocation7 + $0x8] sm:$0xf]
        %v250 = vld [vmem:[#allocation7 + $0xc] sm:$0xf]
        %v251 = vld [vmem:[#allocation7 + $0x10] sm:$0xf]
        %v252 = vld [vmem:[#allocation7 + $0x14] sm:$0xf]
        %v253 = vld [vmem:[#allocation7 + $0x18] sm:$0xf]
        %v254 = vld [vmem:[#allocation7 + $0x1c] sm:$0xf]
        %v255 = vld [vmem:[#allocation7 + $0x20] sm:$0xf]
        %v256 = vld [vmem:[#allocation7 + $0x24] sm:$0xf]
        %v257 = vld [vmem:[#allocation7 + $0x28] sm:$0xf]
        %v258 = vld [vmem:[#allocation7 + $0x2c] sm:$0xf]
        %v259 = vld [vmem:[#allocation7 + $0x30] sm:$0xf]
        %v260 = vld [vmem:[#allocation7 + $0x34] sm:$0xf]
        %v261 = vld [vmem:[#allocation7 + $0x38] sm:$0xf]
        %v262 = vld [vmem:[#allocation7 + $0x3c] sm:$0xf]
        %v279 = vunpack.c.l.b16 %v247
        %v280 = vunpack.c.l.b16 %v248
        %v281 = vunpack.c.l.b16 %v249
        %v282 = vunpack.c.l.b16 %v250
        %v283 = vunpack.c.l.b16 %v251
        %v284 = vunpack.c.l.b16 %v252
        %v285 = vunpack.c.l.b16 %v253
        %v286 = vunpack.c.l.b16 %v254
        %v287 = vunpack.c.l.b16 %v255
        %v288 = vunpack.c.l.b16 %v256
        %v289 = vunpack.c.l.b16 %v257
        %v290 = vunpack.c.l.b16 %v258
        %v291 = vunpack.c.l.b16 %v259
        %v292 = vunpack.c.l.b16 %v260
        %v293 = vunpack.c.l.b16 %v261
        %v294 = vunpack.c.l.b16 %v262
        %v295 = vpack.c.b16 %v280, %v279
        %v296 = vpack.c.b16 %v282, %v281
        %v297 = vpack.c.b16 %v284, %v283
        %v298 = vpack.c.b16 %v286, %v285
        %v299 = vpack.c.b16 %v288, %v287
        %v300 = vpack.c.b16 %v290, %v289
        %v301 = vpack.c.b16 %v292, %v291
        %v302 = vpack.c.b16 %v294, %v293
        %311 = vmatprep.subr.bf16.mxu0 0
        %312 = vmatpush1.bf16.msra.mxu0 %v302
        %313 = vmatprep.subr.bf16.mxu0 0
        %314 = vmatpush1.bf16.msra.mxu0 %v301
        %315 = vmatprep.subr.bf16.mxu0 0
        %316 = vmatpush1.bf16.msra.mxu0 %v300
        %317 = vmatprep.subr.bf16.mxu0 0
        %318 = vmatpush1.bf16.msra.mxu0 %v299
        %319 = vmatprep.subr.bf16.mxu0 0
        %320 = vmatpush1.bf16.msra.mxu0 %v298
        %321 = vmatprep.subr.bf16.mxu0 0
        %322 = vmatpush1.bf16.msra.mxu0 %v297
        %323 = vmatprep.subr.bf16.mxu0 0
        %324 = vmatpush1.bf16.msra.mxu0 %v296
        %325 = vmatprep.subr.bf16.mxu0 0
        %326 = vmatpush1.bf16.msra.mxu0 %v295
        %327 = vmatprep.subr.bf16.mxu0 0
        %328 = vmatpush2.bf16.msra.mxu0 0
        %329 = vmatprep.subr.bf16.mxu0 0
        %330 = vmatpush2.bf16.msra.mxu0 0
        %331 = vmatprep.subr.bf16.mxu0 0
        %332 = vmatpush2.bf16.msra.mxu0 0
        %333 = vmatprep.subr.bf16.mxu0 0
        %334 = vmatpush2.bf16.msra.mxu0 0
        %335 = vmatprep.subr.bf16.mxu0 0
        %336 = vmatpush2.bf16.msra.mxu0 0
        %337 = vmatprep.subr.bf16.mxu0 0
        %338 = vmatpush2.bf16.msra.mxu0 0
        %339 = vmatprep.subr.bf16.mxu0 0
        %340 = vmatpush2.bf16.msra.mxu0 0
        %341 = vmatprep.subr.bf16.mxu0 0
        %342 = vmatpush2.bf16.msra.mxu0 0
        %343 = vmatprep.mubr.bf16.mxu0 0
        %344 = vmatmul.mubr.bf16.gmra.mxu0 %v246
        %v345 = vpop.f32.mrf.mxu0
        %v346 = vadd.f32 0.0, %v345
        %v347 = vpop.f32.mrf.mxu0
        %v348 = vpop.f32.mrf.mxu0
        %v349 = vpop.f32.mrf.mxu0
        %350 = vdwg.mxu0
        %v351 = vadd.f32 %v214, %v346
        %v352 = vld [vmem:[#allocation5 + $0x2] sm:$0x1]
        %v353 = vlaneseq
        %v354 = vshrl.u32 %v353, 7
        %v355 = vsub.s32 0, %v354
        %v356 = vrot.slane %v352, %v355
        %v357 = vadd.f32 %v351, %v356
        %358 = vst [vmem:[%s212] sm:$0xff] %v357
        %s359 = sand.u32 %s97, 1
        %s360 = scalar_lea.sflag [#allocation4], %s359
        %s361 = sand.u32 %s97, 1
        %s362 = smul.addr %s361, 8
        %s363 = scalar_lea.vmem [#allocation8], %s362
        // Predicated region
        $region45: #{tpu_custom_call.1} parent=31 // pred_check
          %p364 = pneg %p107
        $region46: #{tpu_custom_call.1} parent=31 // pred_check_branch
          %366 = sbr.rel (%p364) target = $region48
        $region47: #{tpu_custom_call.1} parent=31 // pred_region
          %s368 = ssub.s32 128, 128
          %369 = vsyncadd %s360, %s368
          %s370 = smul.addr %s21, 128
          %s371 = scalar_lea.hbm %s3, %s370
          %s373 = sshll.u32 %s363, 4
          %s374 = int_to_ptr.vmem [resolvable:$true] %s373
          %376 = dma.vmem_to_hbm [thread:$0]  %s374, 128, %s371, %s360
        $region48: #{tpu_custom_call.1} parent=31 // pred_fallthru
          _
      $region32: #{tpu_custom_call.1} parent=5 // pred_fallthru
        _
      %p377 = scmp.le.s32.totalorder 2, %s16
      // Predicated region
      $region49: #{tpu_custom_call.1} parent=5 // pred_check
        %p378 = pneg %p377
      $region50: #{tpu_custom_call.1} parent=5 // pred_check_branch
        %380 = sbr.rel (%p378) target = $region52
      $region51: #{tpu_custom_call.1} parent=5 // pred_region
        %s381 = ssub.s32 %s16, 2
        // Predicated region
        $region53: #{tpu_custom_call.1} parent=51 // pred_check
          %p382 = pneg %p113
        $region54: #{tpu_custom_call.1} parent=51 // pred_check_branch
          %384 = sbr.rel (%p382) target = $region56
        $region55: #{tpu_custom_call.1} parent=51 // pred_region
          %s385 = sand.u32 %s98, 1
          %s386 = scalar_lea.sflag [#allocation4], %s385
          %s387 = sand.u32 %s98, 1
          %s388 = smul.addr %s387, 8
          %s389 = scalar_lea.vmem [#allocation8], %s388
          %390 = dma.done %s386, 128
        $region56: #{tpu_custom_call.1} parent=51 // pred_fallthru
          _
      $region52: #{tpu_custom_call.1} parent=5 // pred_fallthru
        _
    $region6: #{tpu_custom_call.1} parent=1 // loop_footer
      %s20 = sadd.s32 1, %s16
    $region7: #{tpu_custom_call.1} parent=1 // loop_footer_branch
      %15 = sbr.rel target = $region3
    $region8: #{tpu_custom_call.1} parent=1 // loop_exit
      _
    %391 = vsyncpa [#allocation3], 1
    %s392 = scalar_lea.sflag [#allocation3], 1
    %393 = vsyncpa %s392, 1
    %394 = vsyncpa [#allocation6], 1
    %395 = vsyncpa [#allocation4], 1
    %s396 = scalar_lea.sflag [#allocation4], 1
    %397 = vsyncpa %s396, 1

</llo_original>
